<compile_context>
chip_gen: v5e
topology: v5e:2x2
jax: 0.10.0
libtpu: 0.0.40
codegen_flags: <defaults>
</compile_context>

<pallas_src>
import functools

import jax
import jax.numpy as jnp
from jax.experimental import pallas as pl
from jax.experimental.pallas import tpu as pltpu

IN_DIM = 28 * 28   # 784 (== full array dim, legal as a block dim)
HID_DIM = 200
OUT_DIM = 10
HID_PAD = 256      # 200 -> 256 lanes: lane-dense hidden activation, exact MXU K
OUT_PAD = 128      # fc2 matmul runs on a full 128-lane tile; only 10 lanes stored


def _round_up(x, m):
    return ((x + m - 1) // m) * m


def _mlp_kernel(x_ref, w1_ref, b1_ref, w2_ref, b2_ref, o_ref):
    # x arrives as f32 straight from HBM. ReLU commutes bit-exactly with the bf16
    # cast, so cast first and do the max in bf16 (2 elems/lane on v6e/v7x VALU;
    # v5e lowers via f32 internally with identical results).
    x = jnp.maximum(x_ref[...].astype(jnp.bfloat16), 0)
    h = jnp.dot(x, w1_ref[...], preferred_element_type=jnp.float32) + b1_ref[...]
    h = jnp.maximum(h.astype(jnp.bfloat16), 0)
    o = jnp.dot(h, w2_ref[...], preferred_element_type=jnp.float32) + b2_ref[...]
    # Store only the 10 real logits (masked vst; ~13x fewer HBM bytes than the
    # padded 128-lane slab, and no downstream slice kernel).
    o_ref[...] = o[:, :OUT_DIM].astype(o_ref.dtype)


def prepare_params(w1, b1, w2, b2):
    """One-time prep: PyTorch nn.Linear params (out, in) -> pre-transposed,
    zero-padded, bf16 weight slabs + f32 bias rows (all VMEM-resident)."""
    w1t = jnp.pad(jnp.transpose(w1).astype(jnp.bfloat16),
                  ((0, 0), (0, HID_PAD - HID_DIM)))                  # (784, 256) bf16
    b1r = jnp.pad(b1.astype(jnp.float32).reshape(1, HID_DIM),
                  ((0, 0), (0, HID_PAD - HID_DIM)))                  # (1, 256) f32
    w2t = jnp.pad(jnp.transpose(w2).astype(jnp.bfloat16),
                  ((0, HID_PAD - HID_DIM), (0, OUT_PAD - OUT_DIM)))  # (256, 128) bf16
    b2r = jnp.pad(b2.astype(jnp.float32).reshape(1, OUT_DIM),
                  ((0, 0), (0, OUT_PAD - OUT_DIM)))                  # (1, 128) f32
    return w1t, b1r, w2t, b2r


@functools.partial(jax.jit, static_argnames=("block_b",))
def student_net_forward(x, w1t, b1r, w2t, b2r, *, block_b=2048):
    """x: any shape reshapable to (-1, 784). Params from prepare_params()."""
    x2d = x.reshape(-1, IN_DIM).astype(jnp.float32)   # no-op cast for f32 inputs
    B = x2d.shape[0]

    # Batch tile: multiple of 8 (sublane constraint), at most block_b, and capped
    # at ceil(B/2) so the grid has >= 2 tiles whenever the batch is big enough
    # (megacore sharding on v7x). f32 x tile at TB=2048 is ~6.1 MiB/buffer.
    TB = min(block_b, _round_up(pl.cdiv(B, 2), 8))
    grid_b = pl.cdiv(B, TB)   # ragged boundary block clipped by Pallas; no host pad

    out = pl.pallas_call(
        _mlp_kernel,
        out_shape=jax.ShapeDtypeStruct((B, OUT_DIM), jnp.float32),
        grid=(grid_b,),
        in_specs=[
            pl.BlockSpec((TB, IN_DIM), lambda i: (i, 0)),        # batch-tiled f32 x
            pl.BlockSpec((IN_DIM, HID_PAD), lambda i: (0, 0)),   # resident bf16 w1
            pl.BlockSpec((1, HID_PAD), lambda i: (0, 0)),        # resident b1
            pl.BlockSpec((HID_PAD, OUT_PAD), lambda i: (0, 0)),  # resident bf16 w2
            pl.BlockSpec((1, OUT_PAD), lambda i: (0, 0)),        # resident b2
        ],
        out_specs=pl.BlockSpec((TB, OUT_DIM), lambda i: (i, 0)),
        compiler_params=pltpu.CompilerParams(
            dimension_semantics=("parallel",),   # shards batch tiles across v7x TCs
            vmem_limit_bytes=48 << 20),          # ~20 MiB used at TB=2048; safe on v7x
    )(x2d, w1t, b1r, w2t, b2r)

    return out


def _reference(x, w1, b1, w2, b2):
    x2d = x.reshape(-1, IN_DIM)
    h = jnp.maximum(x2d, 0.0) @ w1.T + b1
    o = jnp.maximum(h, 0.0) @ w2.T + b2
    return o


if __name__ == "__main__":
    key = jax.random.PRNGKey(0)
    kx, k1, k2, k3, k4 = jax.random.split(key, 5)

    # Deterministic parameter init (PyTorch nn.Linear shapes: (out, in))
    w1 = jax.random.normal(k1, (HID_DIM, IN_DIM), dtype=jnp.float32) * 0.02
    b1 = jax.random.normal(k2, (HID_DIM,), dtype=jnp.float32) * 0.01
    w2 = jax.random.normal(k3, (OUT_DIM, HID_DIM), dtype=jnp.float32) * 0.02
    b2 = jax.random.normal(k4, (OUT_DIM,), dtype=jnp.float32) * 0.01
    params = prepare_params(w1, b1, w2, b2)

    # B=8: single-tile path. B=300: multi-tile path with a ragged boundary block
    # (TB=152, grid=2, last block clipped) -- covers the previously untested paths.
    for B in (8, 300):
        xb = jax.random.normal(jax.random.fold_in(kx, B), (B, 1, 28, 28),
                               dtype=jnp.float32)
        out = jax.block_until_ready(student_net_forward(xb, *params))
        ref = _reference(xb, w1, b1, w2, b2)
        assert out.shape == (B, OUT_DIM)
        # bf16 matmul operands (f32 accumulation) -> looser tolerance than pure f32.
        assert jnp.allclose(out, ref, atol=3e-2, rtol=3e-2), f"mismatch (B={B})"

    print("KERNEL_OK")
</pallas_src>

<mosaic_0001>
module attributes {stable_mosaic.version = 11 : i64} {
  func.func @_mlp_kernel(%arg0: i32, %arg1: memref<8x784xf32, #tpu.memory_space<vmem>>, %arg2: memref<784x256xbf16, #tpu.memory_space<vmem>>, %arg3: memref<1x256xf32, #tpu.memory_space<vmem>>, %arg4: memref<256x128xbf16, #tpu.memory_space<vmem>>, %arg5: memref<1x128xf32, #tpu.memory_space<vmem>>, %arg6: memref<8x10xf32, #tpu.memory_space<vmem>>) attributes {dimension_semantics = [#tpu.dimension_semantics<parallel>], iteration_bounds = array<i64: 1>, scalar_prefetch = 0 : i64, scratch_operands = 0 : i64, tpu.core_type = #tpu.core_type<tc>, window_params = [{transform_indices = @transform_0, window_bounds = array<i64: 8, 784>}, {pipeline_mode = #tpu.pipeline_mode<synchronous>, transform_indices = @transform_1, window_bounds = array<i64: 784, 256>}, {pipeline_mode = #tpu.pipeline_mode<synchronous>, transform_indices = @transform_2, window_bounds = array<i64: 1, 256>}, {pipeline_mode = #tpu.pipeline_mode<synchronous>, transform_indices = @transform_3, window_bounds = array<i64: 256, 128>}, {pipeline_mode = #tpu.pipeline_mode<synchronous>, transform_indices = @transform_4, window_bounds = array<i64: 1, 128>}, {transform_indices = @transform_5, window_bounds = array<i64: 8, 10>}]} {
    %c0 = arith.constant 0 : index
    %c0_0 = arith.constant 0 : index
    %0 = vector.load %arg1[%c0, %c0_0] : memref<8x784xf32, #tpu.memory_space<vmem>>, vector<8x784xf32>
    %1 = arith.truncf %0 : vector<8x784xf32> to vector<8x784xbf16>
    %cst = arith.constant 0.000000e+00 : bf16
    %2 = vector.broadcast %cst : bf16 to vector<8x784xbf16>
    %3 = arith.maximumf %1, %2 : vector<8x784xbf16>
    %c0_1 = arith.constant 0 : index
    %c0_2 = arith.constant 0 : index
    %4 = vector.load %arg2[%c0_1, %c0_2] : memref<784x256xbf16, #tpu.memory_space<vmem>>, vector<784x256xbf16>
    %cst_3 = arith.constant dense<0.000000e+00> : vector<8x256xf32>
    %5 = tpu.matmul %3, %4, %cst_3 {dimension_numbers = #tpu.dot_dimension_numbers<[1], [0], [0], [1], [0, 0, 1, 1], [], []>} : vector<8x784xbf16>, vector<784x256xbf16>, vector<8x256xf32> -> vector<8x256xf32>
    %c0_4 = arith.constant 0 : index
    %c0_5 = arith.constant 0 : index
    %6 = vector.load %arg3[%c0_4, %c0_5] : memref<1x256xf32, #tpu.memory_space<vmem>>, vector<1x256xf32>
    %7 = vector.broadcast %6 : vector<1x256xf32> to vector<8x256xf32>
    %8 = arith.addf %5, %7 : vector<8x256xf32>
    %9 = arith.truncf %8 : vector<8x256xf32> to vector<8x256xbf16>
    %cst_6 = arith.constant 0.000000e+00 : bf16
    %10 = vector.broadcast %cst_6 : bf16 to vector<8x256xbf16>
    %11 = arith.maximumf %9, %10 : vector<8x256xbf16>
    %c0_7 = arith.constant 0 : index
    %c0_8 = arith.constant 0 : index
    %12 = vector.load %arg4[%c0_7, %c0_8] : memref<256x128xbf16, #tpu.memory_space<vmem>>, vector<256x128xbf16>
    %cst_9 = arith.constant dense<0.000000e+00> : vector<8x128xf32>
    %13 = tpu.matmul %11, %12, %cst_9 {dimension_numbers = #tpu.dot_dimension_numbers<[1], [0], [0], [1], [0, 0, 1, 1], [], []>} : vector<8x256xbf16>, vector<256x128xbf16>, vector<8x128xf32> -> vector<8x128xf32>
    %c0_10 = arith.constant 0 : index
    %c0_11 = arith.constant 0 : index
    %14 = vector.load %arg5[%c0_10, %c0_11] : memref<1x128xf32, #tpu.memory_space<vmem>>, vector<1x128xf32>
    %15 = vector.broadcast %14 : vector<1x128xf32> to vector<8x128xf32>
    %16 = arith.addf %13, %15 : vector<8x128xf32>
    %17 = vector.extract_strided_slice %16 {offsets = [0, 0], sizes = [8, 10], strides = [1, 1]} : vector<8x128xf32> to vector<8x10xf32>
    %c0_12 = arith.constant 0 : index
    %c0_13 = arith.constant 0 : index
    %18 = vector.load %arg6[%c0_12, %c0_13] : memref<8x10xf32, #tpu.memory_space<vmem>>, vector<8x10xf32>
    tpu.vector_store %arg6[%c0_12, %c0_13], %17 {strides = array<i32>} : memref<8x10xf32, #tpu.memory_space<vmem>>, vector<8x10xf32>,
    return
  }
  func.func @transform_0(%arg0: i32) -> (i32, i32) {
    %c0_i32 = arith.constant 0 : i32
    %c0_i32_0 = arith.constant 0 : i32
    return %arg0, %c0_i32 : i32, i32
  }
  func.func @transform_1(%arg0: i32) -> (i32, i32) {
    %c0_i32 = arith.constant 0 : i32
    %c0_i32_0 = arith.constant 0 : i32
    %c0_i32_1 = arith.constant 0 : i32
    return %c0_i32, %c0_i32_0 : i32, i32
  }
  func.func @transform_2(%arg0: i32) -> (i32, i32) {
    %c0_i32 = arith.constant 0 : i32
    %c0_i32_0 = arith.constant 0 : i32
    %c0_i32_1 = arith.constant 0 : i32
    return %c0_i32, %c0_i32_0 : i32, i32
  }
  func.func @transform_3(%arg0: i32) -> (i32, i32) {
    %c0_i32 = arith.constant 0 : i32
    %c0_i32_0 = arith.constant 0 : i32
    %c0_i32_1 = arith.constant 0 : i32
    return %c0_i32, %c0_i32_0 : i32, i32
  }
  func.func @transform_4(%arg0: i32) -> (i32, i32) {
    %c0_i32 = arith.constant 0 : i32
    %c0_i32_0 = arith.constant 0 : i32
    %c0_i32_1 = arith.constant 0 : i32
    return %c0_i32, %c0_i32_0 : i32, i32
  }
  func.func @transform_5(%arg0: i32) -> (i32, i32) {
    %c0_i32 = arith.constant 0 : i32
    %c0_i32_0 = arith.constant 0 : i32
    return %arg0, %c0_i32 : i32, i32
  }
}

</mosaic_0001>

<llo_original>
// kernel: student_net_forward.1
$region0: #{student_net_forward.1}
  #allocation0 [shape = 'u32[]', space=smem, size = 0x4, offset = 0x4, fixed_abs, tag = 'smem constant byte address 0x4 - core index']
  #allocation1 [shape = 'u32[72,128]{1,0:T(1,128)}', space=vmem, size = 0x9000, scoped, tag = 'internal scratch']
  %s0 = inlined_call_operand.vmem [shape: f32[8,784], index: 0, kind: input, shape index: {}]
  %s1 = inlined_call_operand.vmem [shape: bf16[784,256], index: 1, kind: input, shape index: {}]
  %s2 = inlined_call_operand.vmem [shape: f32[1,256], index: 2, kind: input, shape index: {}]
  %s3 = inlined_call_operand.hbm [shape: bf16[256,128], index: 3, kind: input, shape index: {}]
  %s4 = inlined_call_operand.vmem [shape: f32[1,128], index: 4, kind: input, shape index: {}]
  %s5 = inlined_call_operand.hbm [shape: f32[8,10], index: 5, kind: output, shape index: {}]
  %s6 = sld [smem:[#allocation0]]
  $region34: #{student_net_forward.1} parent=0
    _
  %s8 = ssub.s32 1, %s6
  %s9 = scalar_select 0, %s8, %s6
  $region1: #{student_net_forward.1} parent=0
    #allocation2 [shape = 'u8[65536]{0}', space=vmem, size = 0x10000, scoped, tag = 'input window, operand 3, single buffered']
    #allocation3 [shape = 's32[1]{0}', space=sflag, size = 0x4, scoped, tag = 'scoped memory for student_net_forward.1']
    #allocation4 [shape = 's32[1]{0}', space=sflag, size = 0x4, scoped, tag = 'scoped memory for student_net_forward.1']
    #allocation5 [shape = 'u8[4096]{0}', space=vmem, size = 0x1000, scoped, tag = 'output window, operand 0, single buffered']
    %10 = vsyncpa [#allocation3], 0
    %11 = vsyncpa [#allocation4], 0
    // Predicated region
    $region2: #{student_net_forward.1} parent=1 // pred_check
      _
    $region3: #{student_net_forward.1} parent=1 // pred_check_branch
      %13 = sbr.rel (0) target = $region5
    $region4: #{student_net_forward.1} parent=1 // pred_region
      _
    $region5: #{student_net_forward.1} parent=1 // pred_fallthru
      _
    // Predicated region
    $region6: #{student_net_forward.1} parent=1 // pred_check
      _
    $region7: #{student_net_forward.1} parent=1 // pred_check_branch
      %15 = sbr.rel (0) target = $region9
    $region8: #{student_net_forward.1} parent=1 // pred_region
      _
    $region9: #{student_net_forward.1} parent=1 // pred_fallthru
      _
    // Predicated region
    $region10: #{student_net_forward.1} parent=1 // pred_check
      _
    $region11: #{student_net_forward.1} parent=1 // pred_check_branch
      %17 = sbr.rel (0) target = $region13
    $region12: #{student_net_forward.1} parent=1 // pred_region
      _
    $region13: #{student_net_forward.1} parent=1 // pred_fallthru
      _
    // Predicated region
    $region14: #{student_net_forward.1} parent=1 // pred_check
      _
    $region15: #{student_net_forward.1} parent=1 // pred_check_branch
      %19 = sbr.rel (0) target = $region17
    $region16: #{student_net_forward.1} parent=1 // pred_region
      %21 = vsyncadd [#allocation3], 0
      %s22 = sshll.u32 %s3, 4
      %s23 = int_to_ptr.hbm [resolvable:$true] %s22
      %s24 = sshll.u32 [#allocation2], 4
      %s25 = int_to_ptr.vmem [resolvable:$true] %s24
      %30 = dma.hbm_to_vmem [thread:$0]  %s23, 2048, %s25, [#allocation3], 64, 64, 4
    $region17: #{student_net_forward.1} parent=1 // pred_fallthru
      _
    // Predicated region
    $region18: #{student_net_forward.1} parent=1 // pred_check
      _
    $region19: #{student_net_forward.1} parent=1 // pred_check_branch
      %32 = sbr.rel (0) target = $region21
    $region20: #{student_net_forward.1} parent=1 // pred_region
      _
    $region21: #{student_net_forward.1} parent=1 // pred_fallthru
      _
    // Predicated region
    $region22: #{student_net_forward.1} parent=1 // pred_check
      _
    $region23: #{student_net_forward.1} parent=1 // pred_check_branch
      %34 = sbr.rel (0) target = $region25
    $region24: #{student_net_forward.1} parent=1 // pred_region
      %36 = dma.done [#allocation3], 2048
    $region25: #{student_net_forward.1} parent=1 // pred_fallthru
      _
    %v38 = vld [vmem:[%s0] sm:$0xff]
    %v39 = vld [vmem:[%s0 + $0x8] sm:$0xff]
    %v40 = vld [vmem:[%s0 + $0x10] sm:$0xff]
    %v41 = vld [vmem:[%s0 + $0x18] sm:$0xff]
    %v42 = vld [vmem:[%s0 + $0x20] sm:$0xff]
    %v43 = vld [vmem:[%s0 + $0x28] sm:$0xff]
    %v44 = vld [vmem:[%s0 + $0x30] sm:$0xff]
    %v45 = vpack.c.bf16 %v39, %v38
    %v46 = vpack.c.bf16 %v41, %v40
    %v47 = vpack.c.bf16 %v43, %v42
    %v48 = vpack.c.bf16 %v44, %v44
    %v49 = vunpack.c.l.bf16 %v45
    %v50 = vunpack.c.h.bf16 %v45
    %v51 = vunpack.c.l.bf16 %v46
    %v52 = vunpack.c.h.bf16 %v46
    %v53 = vunpack.c.l.bf16 %v47
    %v54 = vunpack.c.h.bf16 %v47
    %v55 = vunpack.c.l.bf16 %v48
    %v56 = vmax.f32 %v49, 0.0
    %v57 = vmax.f32 %v50, 0.0
    %v58 = vmax.f32 %v51, 0.0
    %v59 = vmax.f32 %v52, 0.0
    %v60 = vmax.f32 %v53, 0.0
    %v61 = vmax.f32 %v54, 0.0
    %v62 = vmax.f32 %v55, 0.0
    %v63 = vpack.c.bf16 %v56, %v56
    %v64 = vpack.c.bf16 %v57, %v57
    %v65 = vpack.c.bf16 %v58, %v58
    %v66 = vpack.c.bf16 %v59, %v59
    %v67 = vpack.c.bf16 %v60, %v60
    %v68 = vpack.c.bf16 %v61, %v61
    %v69 = vpack.c.bf16 %v62, %v62
    %v70 = vld [vmem:[%s1] sm:$0xff]
    %v71 = vld [vmem:[%s1 + $0x8] sm:$0xff]
    %v72 = vld [vmem:[%s1 + $0x10] sm:$0xff]
    %v73 = vld [vmem:[%s1 + $0x18] sm:$0xff]
    %v74 = vld [vmem:[%s1 + $0x20] sm:$0xff]
    %v75 = vld [vmem:[%s1 + $0x28] sm:$0xff]
    %v76 = vld [vmem:[%s1 + $0x30] sm:$0xff]
    %v77 = vld [vmem:[%s1 + $0x38] sm:$0xff]
    %v78 = vld [vmem:[%s1 + $0x40] sm:$0xff]
    %v79 = vld [vmem:[%s1 + $0x48] sm:$0xff]
    %v80 = vld [vmem:[%s1 + $0x50] sm:$0xff]
    %v81 = vld [vmem:[%s1 + $0x58] sm:$0xff]
    %v82 = vld [vmem:[%s1 + $0x60] sm:$0xff]
    %v83 = vld [vmem:[%s1 + $0x68] sm:$0xff]
    %v84 = vld [vmem:[%s1 + $0x70] sm:$0xff]
    %v85 = vld [vmem:[%s1 + $0x78] sm:$0xff]
    %v86 = vld [vmem:[%s1 + $0x80] sm:$0xff]
    %v87 = vld [vmem:[%s1 + $0x88] sm:$0xff]
    %v88 = vld [vmem:[%s1 + $0x90] sm:$0xff]
    %v89 = vld [vmem:[%s1 + $0x98] sm:$0xff]
    %v90 = vld [vmem:[%s1 + $0xa0] sm:$0xff]
    %v91 = vld [vmem:[%s1 + $0xa8] sm:$0xff]
    %v92 = vld [vmem:[%s1 + $0xb0] sm:$0xff]
    %v93 = vld [vmem:[%s1 + $0xb8] sm:$0xff]
    %v94 = vld [vmem:[%s1 + $0xc0] sm:$0xff]
    %v95 = vld [vmem:[%s1 + $0xc8] sm:$0xff]
    %v96 = vld [vmem:[%s1 + $0xd0] sm:$0xff]
    %v97 = vld [vmem:[%s1 + $0xd8] sm:$0xff]
    %v98 = vld [vmem:[%s1 + $0xe0] sm:$0xff]
    %v99 = vld [vmem:[%s1 + $0xe8] sm:$0xff]
    %v100 = vld [vmem:[%s1 + $0xf0] sm:$0xff]
    %v101 = vld [vmem:[%s1 + $0xf8] sm:$0xff]
    %v102 = vld [vmem:[%s1 + $0x100] sm:$0xff]
    %v103 = vld [vmem:[%s1 + $0x108] sm:$0xff]
    %v104 = vld [vmem:[%s1 + $0x110] sm:$0xff]
    %v105 = vld [vmem:[%s1 + $0x118] sm:$0xff]
    %v106 = vld [vmem:[%s1 + $0x120] sm:$0xff]
    %v107 = vld [vmem:[%s1 + $0x128] sm:$0xff]
    %v108 = vld [vmem:[%s1 + $0x130] sm:$0xff]
    %v109 = vld [vmem:[%s1 + $0x138] sm:$0xff]
    %v110 = vld [vmem:[%s1 + $0x140] sm:$0xff]
    %v111 = vld [vmem:[%s1 + $0x148] sm:$0xff]
    %v112 = vld [vmem:[%s1 + $0x150] sm:$0xff]
    %v113 = vld [vmem:[%s1 + $0x158] sm:$0xff]
    %v114 = vld [vmem:[%s1 + $0x160] sm:$0xff]
    %v115 = vld [vmem:[%s1 + $0x168] sm:$0xff]
    %v116 = vld [vmem:[%s1 + $0x170] sm:$0xff]
    %v117 = vld [vmem:[%s1 + $0x178] sm:$0xff]
    %v118 = vld [vmem:[%s1 + $0x180] sm:$0xff]
    %v119 = vld [vmem:[%s1 + $0x188] sm:$0xff]
    %v120 = vld [vmem:[%s1 + $0x190] sm:$0xff]
    %v121 = vld [vmem:[%s1 + $0x198] sm:$0xff]
    %v122 = vld [vmem:[%s1 + $0x1a0] sm:$0xff]
    %v123 = vld [vmem:[%s1 + $0x1a8] sm:$0xff]
    %v124 = vld [vmem:[%s1 + $0x1b0] sm:$0xff]
    %v125 = vld [vmem:[%s1 + $0x1b8] sm:$0xff]
    %v126 = vld [vmem:[%s1 + $0x1c0] sm:$0xff]
    %v127 = vld [vmem:[%s1 + $0x1c8] sm:$0xff]
    %v128 = vld [vmem:[%s1 + $0x1d0] sm:$0xff]
    %v129 = vld [vmem:[%s1 + $0x1d8] sm:$0xff]
    %v130 = vld [vmem:[%s1 + $0x1e0] sm:$0xff]
    %v131 = vld [vmem:[%s1 + $0x1e8] sm:$0xff]
    %v132 = vld [vmem:[%s1 + $0x1f0] sm:$0xff]
    %v133 = vld [vmem:[%s1 + $0x1f8] sm:$0xff]
    %v134 = vld [vmem:[%s1 + $0x200] sm:$0xff]
    %v135 = vld [vmem:[%s1 + $0x208] sm:$0xff]
    %v136 = vld [vmem:[%s1 + $0x210] sm:$0xff]
    %v137 = vld [vmem:[%s1 + $0x218] sm:$0xff]
    %v138 = vld [vmem:[%s1 + $0x220] sm:$0xff]
    %v139 = vld [vmem:[%s1 + $0x228] sm:$0xff]
    %v140 = vld [vmem:[%s1 + $0x230] sm:$0xff]
    %v141 = vld [vmem:[%s1 + $0x238] sm:$0xff]
    %v142 = vld [vmem:[%s1 + $0x240] sm:$0xff]
    %v143 = vld [vmem:[%s1 + $0x248] sm:$0xff]
    %v144 = vld [vmem:[%s1 + $0x250] sm:$0xff]
    %v145 = vld [vmem:[%s1 + $0x258] sm:$0xff]
    %v146 = vld [vmem:[%s1 + $0x260] sm:$0xff]
    %v147 = vld [vmem:[%s1 + $0x268] sm:$0xff]
    %v148 = vld [vmem:[%s1 + $0x270] sm:$0xff]
    %v149 = vld [vmem:[%s1 + $0x278] sm:$0xff]
    %v150 = vld [vmem:[%s1 + $0x280] sm:$0xff]
    %v151 = vld [vmem:[%s1 + $0x288] sm:$0xff]
    %v152 = vld [vmem:[%s1 + $0x290] sm:$0xff]
    %v153 = vld [vmem:[%s1 + $0x298] sm:$0xff]
    %v154 = vld [vmem:[%s1 + $0x2a0] sm:$0xff]
    %v155 = vld [vmem:[%s1 + $0x2a8] sm:$0xff]
    %v156 = vld [vmem:[%s1 + $0x2b0] sm:$0xff]
    %v157 = vld [vmem:[%s1 + $0x2b8] sm:$0xff]
    %v158 = vld [vmem:[%s1 + $0x2c0] sm:$0xff]
    %v159 = vld [vmem:[%s1 + $0x2c8] sm:$0xff]
    %v160 = vld [vmem:[%s1 + $0x2d0] sm:$0xff]
    %v161 = vld [vmem:[%s1 + $0x2d8] sm:$0xff]
    %v162 = vld [vmem:[%s1 + $0x2e0] sm:$0xff]
    %v163 = vld [vmem:[%s1 + $0x2e8] sm:$0xff]
    %v164 = vld [vmem:[%s1 + $0x2f0] sm:$0xff]
    %v165 = vld [vmem:[%s1 + $0x2f8] sm:$0xff]
    %v166 = vld [vmem:[%s1 + $0x300] sm:$0xff]
    %v167 = vld [vmem:[%s1 + $0x308] sm:$0xff]
    %v168 = vld [vmem:[%s2] sm:$0x3]
    %v170 = vperm.slane %v168, 0
    %v171 = vperm.slane %v168, 1
    %v272 = vunpack.c.l.b16 %v70
    %v273 = vunpack.c.h.b16 %v70
    %v274 = vunpack.c.l.b16 %v71
    %v275 = vunpack.c.h.b16 %v71
    %v276 = vunpack.c.l.b16 %v72
    %v277 = vunpack.c.h.b16 %v72
    %v278 = vunpack.c.l.b16 %v73
    %v279 = vunpack.c.h.b16 %v73
    %v280 = vunpack.c.l.b16 %v74
    %v281 = vunpack.c.h.b16 %v74
    %v282 = vunpack.c.l.b16 %v75
    %v283 = vunpack.c.h.b16 %v75
    %v284 = vunpack.c.l.b16 %v76
    %v285 = vunpack.c.h.b16 %v76
    %v286 = vunpack.c.l.b16 %v77
    %v287 = vunpack.c.h.b16 %v77
    %v288 = vunpack.c.l.b16 %v78
    %v289 = vunpack.c.h.b16 %v78
    %v290 = vunpack.c.l.b16 %v79
    %v291 = vunpack.c.h.b16 %v79
    %v292 = vunpack.c.l.b16 %v80
    %v293 = vunpack.c.h.b16 %v80
    %v294 = vunpack.c.l.b16 %v81
    %v295 = vunpack.c.h.b16 %v81
    %v296 = vunpack.c.l.b16 %v82
    %v297 = vunpack.c.h.b16 %v82
    %v298 = vunpack.c.l.b16 %v83
    %v299 = vunpack.c.h.b16 %v83
    %v300 = vunpack.c.l.b16 %v84
    %v301 = vunpack.c.h.b16 %v84
    %v302 = vunpack.c.l.b16 %v85
    %v303 = vunpack.c.h.b16 %v85
    %v304 = vunpack.c.l.b16 %v86
    %v305 = vunpack.c.h.b16 %v86
    %v306 = vunpack.c.l.b16 %v87
    %v307 = vunpack.c.h.b16 %v87
    %v308 = vunpack.c.l.b16 %v88
    %v309 = vunpack.c.h.b16 %v88
    %v310 = vunpack.c.l.b16 %v89
    %v311 = vunpack.c.h.b16 %v89
    %v312 = vunpack.c.l.b16 %v90
    %v313 = vunpack.c.h.b16 %v90
    %v314 = vunpack.c.l.b16 %v91
    %v315 = vunpack.c.h.b16 %v91
    %v316 = vunpack.c.l.b16 %v92
    %v317 = vunpack.c.h.b16 %v92
    %v318 = vunpack.c.l.b16 %v93
    %v319 = vunpack.c.h.b16 %v93
    %v320 = vunpack.c.l.b16 %v94
    %v321 = vunpack.c.h.b16 %v94
    %v322 = vunpack.c.l.b16 %v95
    %v323 = vunpack.c.h.b16 %v95
    %v324 = vunpack.c.l.b16 %v96
    %v325 = vunpack.c.h.b16 %v96
    %v326 = vunpack.c.l.b16 %v97
    %v327 = vunpack.c.h.b16 %v97
    %v328 = vunpack.c.l.b16 %v98
    %v329 = vunpack.c.h.b16 %v98
    %v330 = vunpack.c.l.b16 %v99
    %v331 = vunpack.c.h.b16 %v99
    %v332 = vunpack.c.l.b16 %v100
    %v333 = vunpack.c.h.b16 %v100
    %v334 = vunpack.c.l.b16 %v101
    %v335 = vunpack.c.h.b16 %v101
    %v336 = vunpack.c.l.b16 %v102
    %v337 = vunpack.c.h.b16 %v102
    %v338 = vunpack.c.l.b16 %v103
    %v339 = vunpack.c.h.b16 %v103
    %v340 = vunpack.c.l.b16 %v104
    %v341 = vunpack.c.h.b16 %v104
    %v342 = vunpack.c.l.b16 %v105
    %v343 = vunpack.c.h.b16 %v105
    %v344 = vunpack.c.l.b16 %v106
    %v345 = vunpack.c.h.b16 %v106
    %v346 = vunpack.c.l.b16 %v107
    %v347 = vunpack.c.h.b16 %v107
    %v348 = vunpack.c.l.b16 %v108
    %v349 = vunpack.c.h.b16 %v108
    %v350 = vunpack.c.l.b16 %v109
    %v351 = vunpack.c.h.b16 %v109
    %v352 = vunpack.c.l.b16 %v110
    %v353 = vunpack.c.h.b16 %v110
    %v354 = vunpack.c.l.b16 %v111
    %v355 = vunpack.c.h.b16 %v111
    %v356 = vunpack.c.l.b16 %v112
    %v357 = vunpack.c.h.b16 %v112
    %v358 = vunpack.c.l.b16 %v113
    %v359 = vunpack.c.h.b16 %v113
    %v360 = vunpack.c.l.b16 %v114
    %v361 = vunpack.c.h.b16 %v114
    %v362 = vunpack.c.l.b16 %v115
    %v363 = vunpack.c.h.b16 %v115
    %v364 = vunpack.c.l.b16 %v116
    %v365 = vunpack.c.h.b16 %v116
    %v366 = vunpack.c.l.b16 %v117
    %v367 = vunpack.c.h.b16 %v117
    %v368 = vunpack.c.l.b16 %v118
    %v369 = vunpack.c.h.b16 %v118
    %v370 = vunpack.c.l.b16 %v119
    %v371 = vunpack.c.h.b16 %v119
    %v372 = vunpack.c.l.b16 %v120
    %v373 = vunpack.c.h.b16 %v120
    %v374 = vunpack.c.l.b16 %v121
    %v375 = vunpack.c.h.b16 %v121
    %v376 = vunpack.c.l.b16 %v122
    %v377 = vunpack.c.h.b16 %v122
    %v378 = vunpack.c.l.b16 %v123
    %v379 = vunpack.c.h.b16 %v123
    %v380 = vunpack.c.l.b16 %v124
    %v381 = vunpack.c.h.b16 %v124
    %v382 = vunpack.c.l.b16 %v125
    %v383 = vunpack.c.h.b16 %v125
    %v384 = vunpack.c.l.b16 %v126
    %v385 = vunpack.c.h.b16 %v126
    %v386 = vunpack.c.l.b16 %v127
    %v387 = vunpack.c.h.b16 %v127
    %v388 = vunpack.c.l.b16 %v128
    %v389 = vunpack.c.h.b16 %v128
    %v390 = vunpack.c.l.b16 %v129
    %v391 = vunpack.c.h.b16 %v129
    %v392 = vunpack.c.l.b16 %v130
    %v393 = vunpack.c.h.b16 %v130
    %v394 = vunpack.c.l.b16 %v131
    %v395 = vunpack.c.h.b16 %v131
    %v396 = vunpack.c.l.b16 %v132
    %v397 = vunpack.c.h.b16 %v132
    %v398 = vunpack.c.l.b16 %v133
    %v399 = vunpack.c.h.b16 %v133
    %v400 = vunpack.c.l.b16 %v134
    %v401 = vunpack.c.h.b16 %v134
    %v402 = vunpack.c.l.b16 %v135
    %v403 = vunpack.c.h.b16 %v135
    %v404 = vunpack.c.l.b16 %v136
    %v405 = vunpack.c.h.b16 %v136
    %v406 = vunpack.c.l.b16 %v137
    %v407 = vunpack.c.h.b16 %v137
    %v408 = vunpack.c.l.b16 %v138
    %v409 = vunpack.c.h.b16 %v138
    %v410 = vunpack.c.l.b16 %v139
    %v411 = vunpack.c.h.b16 %v139
    %v412 = vunpack.c.l.b16 %v140
    %v413 = vunpack.c.h.b16 %v140
    %v414 = vunpack.c.l.b16 %v141
    %v415 = vunpack.c.h.b16 %v141
    %v416 = vunpack.c.l.b16 %v142
    %v417 = vunpack.c.h.b16 %v142
    %v418 = vunpack.c.l.b16 %v143
    %v419 = vunpack.c.h.b16 %v143
    %v420 = vunpack.c.l.b16 %v144
    %v421 = vunpack.c.h.b16 %v144
    %v422 = vunpack.c.l.b16 %v145
    %v423 = vunpack.c.h.b16 %v145
    %v424 = vunpack.c.l.b16 %v146
    %v425 = vunpack.c.h.b16 %v146
    %v426 = vunpack.c.l.b16 %v147
    %v427 = vunpack.c.h.b16 %v147
    %v428 = vunpack.c.l.b16 %v148
    %v429 = vunpack.c.h.b16 %v148
    %v430 = vunpack.c.l.b16 %v149
    %v431 = vunpack.c.h.b16 %v149
    %v432 = vunpack.c.l.b16 %v150
    %v433 = vunpack.c.h.b16 %v150
    %v434 = vunpack.c.l.b16 %v151
    %v435 = vunpack.c.h.b16 %v151
    %v436 = vunpack.c.l.b16 %v152
    %v437 = vunpack.c.h.b16 %v152
    %v438 = vunpack.c.l.b16 %v153
    %v439 = vunpack.c.h.b16 %v153
    %v440 = vunpack.c.l.b16 %v154
    %v441 = vunpack.c.h.b16 %v154
    %v442 = vunpack.c.l.b16 %v155
    %v443 = vunpack.c.h.b16 %v155
    %v444 = vunpack.c.l.b16 %v156
    %v445 = vunpack.c.h.b16 %v156
    %v446 = vunpack.c.l.b16 %v157
    %v447 = vunpack.c.h.b16 %v157
    %v448 = vunpack.c.l.b16 %v158
    %v449 = vunpack.c.h.b16 %v158
    %v450 = vunpack.c.l.b16 %v159
    %v451 = vunpack.c.h.b16 %v159
    %v452 = vunpack.c.l.b16 %v160
    %v453 = vunpack.c.h.b16 %v160
    %v454 = vunpack.c.l.b16 %v161
    %v455 = vunpack.c.h.b16 %v161
    %v456 = vunpack.c.l.b16 %v162
    %v457 = vunpack.c.h.b16 %v162
    %v458 = vunpack.c.l.b16 %v163
    %v459 = vunpack.c.h.b16 %v163
    %v460 = vunpack.c.l.b16 %v164
    %v461 = vunpack.c.h.b16 %v164
    %v462 = vunpack.c.l.b16 %v165
    %v463 = vunpack.c.h.b16 %v165
    %v464 = vunpack.c.l.b16 %v166
    %v465 = vunpack.c.h.b16 %v166
    %v466 = vunpack.c.l.b16 %v167
    %v467 = vunpack.c.h.b16 %v167
    %v468 = vpack.c.b16 %v274, %v272
    %v469 = vpack.c.b16 %v275, %v273
    %v470 = vpack.c.b16 %v278, %v276
    %v471 = vpack.c.b16 %v279, %v277
    %v472 = vpack.c.b16 %v282, %v280
    %v473 = vpack.c.b16 %v283, %v281
    %v474 = vpack.c.b16 %v286, %v284
    %v475 = vpack.c.b16 %v287, %v285
    %v476 = vpack.c.b16 %v290, %v288
    %v477 = vpack.c.b16 %v291, %v289
    %v478 = vpack.c.b16 %v294, %v292
    %v479 = vpack.c.b16 %v295, %v293
    %v480 = vpack.c.b16 %v298, %v296
    %v481 = vpack.c.b16 %v299, %v297
    %v482 = vpack.c.b16 %v302, %v300
    %v483 = vpack.c.b16 %v303, %v301
    %v484 = vpack.c.b16 %v306, %v304
    %v485 = vpack.c.b16 %v307, %v305
    %v486 = vpack.c.b16 %v310, %v308
    %v487 = vpack.c.b16 %v311, %v309
    %v488 = vpack.c.b16 %v314, %v312
    %v489 = vpack.c.b16 %v315, %v313
    %v490 = vpack.c.b16 %v318, %v316
    %v491 = vpack.c.b16 %v319, %v317
    %v492 = vpack.c.b16 %v322, %v320
    %v493 = vpack.c.b16 %v323, %v321
    %v494 = vpack.c.b16 %v326, %v324
    %v495 = vpack.c.b16 %v327, %v325
    %v496 = vpack.c.b16 %v330, %v328
    %v497 = vpack.c.b16 %v331, %v329
    %v498 = vpack.c.b16 %v334, %v332
    %v499 = vpack.c.b16 %v335, %v333
    %v500 = vpack.c.b16 %v338, %v336
    %v501 = vpack.c.b16 %v339, %v337
    %v502 = vpack.c.b16 %v342, %v340
    %v503 = vpack.c.b16 %v343, %v341
    %v504 = vpack.c.b16 %v346, %v344
    %v505 = vpack.c.b16 %v347, %v345
    %v506 = vpack.c.b16 %v350, %v348
    %v507 = vpack.c.b16 %v351, %v349
    %v508 = vpack.c.b16 %v354, %v352
    %v509 = vpack.c.b16 %v355, %v353
    %v510 = vpack.c.b16 %v358, %v356
    %v511 = vpack.c.b16 %v359, %v357
    %v512 = vpack.c.b16 %v362, %v360
    %v513 = vpack.c.b16 %v363, %v361
    %v514 = vpack.c.b16 %v366, %v364
    %v515 = vpack.c.b16 %v367, %v365
    %v516 = vpack.c.b16 %v370, %v368
    %v517 = vpack.c.b16 %v371, %v369
    %v518 = vpack.c.b16 %v374, %v372
    %v519 = vpack.c.b16 %v375, %v373
    %v520 = vpack.c.b16 %v378, %v376
    %v521 = vpack.c.b16 %v379, %v377
    %v522 = vpack.c.b16 %v382, %v380
    %v523 = vpack.c.b16 %v383, %v381
    %v524 = vpack.c.b16 %v386, %v384
    %v525 = vpack.c.b16 %v387, %v385
    %v526 = vpack.c.b16 %v390, %v388
    %v527 = vpack.c.b16 %v391, %v389
    %v528 = vpack.c.b16 %v394, %v392
    %v529 = vpack.c.b16 %v395, %v393
    %v530 = vpack.c.b16 %v398, %v396
    %v531 = vpack.c.b16 %v399, %v397
    %v532 = vpack.c.b16 %v402, %v400
    %v533 = vpack.c.b16 %v403, %v401
    %v534 = vpack.c.b16 %v406, %v404
    %v535 = vpack.c.b16 %v407, %v405
    %v536 = vpack.c.b16 %v410, %v408
    %v537 = vpack.c.b16 %v411, %v409
    %v538 = vpack.c.b16 %v414, %v412
    %v539 = vpack.c.b16 %v415, %v413
    %v540 = vpack.c.b16 %v418, %v416
    %v541 = vpack.c.b16 %v419, %v417
    %v542 = vpack.c.b16 %v422, %v420
    %v543 = vpack.c.b16 %v423, %v421
    %v544 = vpack.c.b16 %v426, %v424
    %v545 = vpack.c.b16 %v427, %v425
    %v546 = vpack.c.b16 %v430, %v428
    %v547 = vpack.c.b16 %v431, %v429
    %v548 = vpack.c.b16 %v434, %v432
    %v549 = vpack.c.b16 %v435, %v433
    %v550 = vpack.c.b16 %v438, %v436
    %v551 = vpack.c.b16 %v439, %v437
    %v552 = vpack.c.b16 %v442, %v440
    %v553 = vpack.c.b16 %v443, %v441
    %v554 = vpack.c.b16 %v446, %v444
    %v555 = vpack.c.b16 %v447, %v445
    %v556 = vpack.c.b16 %v450, %v448
    %v557 = vpack.c.b16 %v451, %v449
    %v558 = vpack.c.b16 %v454, %v452
    %v559 = vpack.c.b16 %v455, %v453
    %v560 = vpack.c.b16 %v458, %v456
    %v561 = vpack.c.b16 %v459, %v457
    %v562 = vpack.c.b16 %v462, %v460
    %v563 = vpack.c.b16 %v463, %v461
    %v564 = vpack.c.b16 %v466, %v464
    %v565 = vpack.c.b16 %v467, %v465
    %vm664 = vcmask 130048
    %v666 = vsel %vm664, %v69, 0
    %668 = vmatpush.bf16.msra.mxu0 %v482
    %669 = vmatpush.bf16.msra.mxu0 %v480
    %670 = vmatpush.bf16.msra.mxu0 %v478
    %671 = vmatpush.bf16.msra.mxu0 %v476
    %672 = vmatpush.bf16.msra.mxu0 %v474
    %673 = vmatpush.bf16.msra.mxu0 %v472
    %674 = vmatpush.bf16.msra.mxu0 %v470
    %675 = vmatpush.bf16.msra.mxu0 %v468
    %676 = vmatmul.bf16.gmra.mxu0 %v63
    %v677 = vpop.f32.mrf.mxu0
    %v678 = vadd.f32 %v170, %v677
    %v679 = vpop.f32.mrf.mxu0
    %680 = vdwg.mxu0
    %681 = vmatpush.bf16.msra.mxu0 %v498
    %682 = vmatpush.bf16.msra.mxu0 %v496
    %683 = vmatpush.bf16.msra.mxu0 %v494
    %684 = vmatpush.bf16.msra.mxu0 %v492
    %685 = vmatpush.bf16.msra.mxu0 %v490
    %686 = vmatpush.bf16.msra.mxu0 %v488
    %687 = vmatpush.bf16.msra.mxu0 %v486
    %688 = vmatpush.bf16.msra.mxu0 %v484
    %689 = vmatmul.bf16.gmra.mxu0 %v64
    %v690 = vpop.f32.mrf.mxu0
    %v691 = vadd.f32 %v678, %v690
    %v692 = vpop.f32.mrf.mxu0
    %693 = vdwg.mxu0
    %694 = vmatpush.bf16.msra.mxu0 %v514
    %695 = vmatpush.bf16.msra.mxu0 %v512
    %696 = vmatpush.bf16.msra.mxu0 %v510
    %697 = vmatpush.bf16.msra.mxu0 %v508
    %698 = vmatpush.bf16.msra.mxu0 %v506
    %699 = vmatpush.bf16.msra.mxu0 %v504
    %700 = vmatpush.bf16.msra.mxu0 %v502
    %701 = vmatpush.bf16.msra.mxu0 %v500
    %702 = vmatmul.bf16.gmra.mxu0 %v65
    %v703 = vpop.f32.mrf.mxu0
    %v704 = vadd.f32 %v691, %v703
    %v705 = vpop.f32.mrf.mxu0
    %706 = vdwg.mxu0
    %707 = vmatpush.bf16.msra.mxu0 %v530
    %708 = vmatpush.bf16.msra.mxu0 %v528
    %709 = vmatpush.bf16.msra.mxu0 %v526
    %710 = vmatpush.bf16.msra.mxu0 %v524
    %711 = vmatpush.bf16.msra.mxu0 %v522
    %712 = vmatpush.bf16.msra.mxu0 %v520
    %713 = vmatpush.bf16.msra.mxu0 %v518
    %714 = vmatpush.bf16.msra.mxu0 %v516
    %715 = vmatmul.bf16.gmra.mxu0 %v66
    %v716 = vpop.f32.mrf.mxu0
    %v717 = vadd.f32 %v704, %v716
    %v718 = vpop.f32.mrf.mxu0
    %719 = vdwg.mxu0
    %720 = vmatpush.bf16.msra.mxu0 %v546
    %721 = vmatpush.bf16.msra.mxu0 %v544
    %722 = vmatpush.bf16.msra.mxu0 %v542
    %723 = vmatpush.bf16.msra.mxu0 %v540
    %724 = vmatpush.bf16.msra.mxu0 %v538
    %725 = vmatpush.bf16.msra.mxu0 %v536
    %726 = vmatpush.bf16.msra.mxu0 %v534
    %727 = vmatpush.bf16.msra.mxu0 %v532
    %728 = vmatmul.bf16.gmra.mxu0 %v67
    %v729 = vpop.f32.mrf.mxu0
    %v730 = vadd.f32 %v717, %v729
    %v731 = vpop.f32.mrf.mxu0
    %732 = vdwg.mxu0
    %733 = vmatpush.bf16.msra.mxu0 %v562
    %734 = vmatpush.bf16.msra.mxu0 %v560
    %735 = vmatpush.bf16.msra.mxu0 %v558
    %736 = vmatpush.bf16.msra.mxu0 %v556
    %737 = vmatpush.bf16.msra.mxu0 %v554
    %738 = vmatpush.bf16.msra.mxu0 %v552
    %739 = vmatpush.bf16.msra.mxu0 %v550
    %740 = vmatpush.bf16.msra.mxu0 %v548
    %741 = vmatmul.bf16.gmra.mxu0 %v68
    %v742 = vpop.f32.mrf.mxu0
    %v743 = vadd.f32 %v730, %v742
    %v744 = vpop.f32.mrf.mxu0
    %745 = vdwg.mxu0
    %746 = vmatpush.bf16.msra.mxu0 0
    %747 = vmatpush.bf16.msra.mxu0 0
    %748 = vmatpush.bf16.msra.mxu0 0
    %749 = vmatpush.bf16.msra.mxu0 0
    %750 = vmatpush.bf16.msra.mxu0 0
    %751 = vmatpush.bf16.msra.mxu0 0
    %752 = vmatpush.bf16.msra.mxu0 0
    %753 = vmatpush.bf16.msra.mxu0 %v564
    %754 = vmatmul.bf16.gmra.mxu0 %v666
    %v755 = vpop.f32.mrf.mxu0
    %v756 = vadd.f32 %v743, %v755
    %v757 = vpop.f32.mrf.mxu0
    %758 = vdwg.mxu0
    %759 = vmatpush.bf16.msra.mxu0 %v483
    %760 = vmatpush.bf16.msra.mxu0 %v481
    %761 = vmatpush.bf16.msra.mxu0 %v479
    %762 = vmatpush.bf16.msra.mxu0 %v477
    %763 = vmatpush.bf16.msra.mxu0 %v475
    %764 = vmatpush.bf16.msra.mxu0 %v473
    %765 = vmatpush.bf16.msra.mxu0 %v471
    %766 = vmatpush.bf16.msra.mxu0 %v469
    %767 = vmatmul.bf16.gmra.mxu0 %v63
    %v768 = vpop.f32.mrf.mxu0
    %v769 = vadd.f32 %v171, %v768
    %v770 = vpop.f32.mrf.mxu0
    %771 = vdwg.mxu0
    %772 = vmatpush.bf16.msra.mxu0 %v499
    %773 = vmatpush.bf16.msra.mxu0 %v497
    %774 = vmatpush.bf16.msra.mxu0 %v495
    %775 = vmatpush.bf16.msra.mxu0 %v493
    %776 = vmatpush.bf16.msra.mxu0 %v491
    %777 = vmatpush.bf16.msra.mxu0 %v489
    %778 = vmatpush.bf16.msra.mxu0 %v487
    %779 = vmatpush.bf16.msra.mxu0 %v485
    %780 = vmatmul.bf16.gmra.mxu0 %v64
    %v781 = vpop.f32.mrf.mxu0
    %v782 = vadd.f32 %v769, %v781
    %v783 = vpop.f32.mrf.mxu0
    %784 = vdwg.mxu0
    %785 = vmatpush.bf16.msra.mxu0 %v515
    %786 = vmatpush.bf16.msra.mxu0 %v513
    %787 = vmatpush.bf16.msra.mxu0 %v511
    %788 = vmatpush.bf16.msra.mxu0 %v509
    %789 = vmatpush.bf16.msra.mxu0 %v507
    %790 = vmatpush.bf16.msra.mxu0 %v505
    %791 = vmatpush.bf16.msra.mxu0 %v503
    %792 = vmatpush.bf16.msra.mxu0 %v501
    %793 = vmatmul.bf16.gmra.mxu0 %v65
    %v794 = vpop.f32.mrf.mxu0
    %v795 = vadd.f32 %v782, %v794
    %v796 = vpop.f32.mrf.mxu0
    %797 = vdwg.mxu0
    %798 = vmatpush.bf16.msra.mxu0 %v531
    %799 = vmatpush.bf16.msra.mxu0 %v529
    %800 = vmatpush.bf16.msra.mxu0 %v527
    %801 = vmatpush.bf16.msra.mxu0 %v525
    %802 = vmatpush.bf16.msra.mxu0 %v523
    %803 = vmatpush.bf16.msra.mxu0 %v521
    %804 = vmatpush.bf16.msra.mxu0 %v519
    %805 = vmatpush.bf16.msra.mxu0 %v517
    %806 = vmatmul.bf16.gmra.mxu0 %v66
    %v807 = vpop.f32.mrf.mxu0
    %v808 = vadd.f32 %v795, %v807
    %v809 = vpop.f32.mrf.mxu0
    %810 = vdwg.mxu0
    %811 = vmatpush.bf16.msra.mxu0 %v547
    %812 = vmatpush.bf16.msra.mxu0 %v545
    %813 = vmatpush.bf16.msra.mxu0 %v543
    %814 = vmatpush.bf16.msra.mxu0 %v541
    %815 = vmatpush.bf16.msra.mxu0 %v539
    %816 = vmatpush.bf16.msra.mxu0 %v537
    %817 = vmatpush.bf16.msra.mxu0 %v535
    %818 = vmatpush.bf16.msra.mxu0 %v533
    %819 = vmatmul.bf16.gmra.mxu0 %v67
    %v820 = vpop.f32.mrf.mxu0
    %v821 = vadd.f32 %v808, %v820
    %v822 = vpop.f32.mrf.mxu0
    %823 = vdwg.mxu0
    %824 = vmatpush.bf16.msra.mxu0 %v563
    %825 = vmatpush.bf16.msra.mxu0 %v561
    %826 = vmatpush.bf16.msra.mxu0 %v559
    %827 = vmatpush.bf16.msra.mxu0 %v557
    %828 = vmatpush.bf16.msra.mxu0 %v555
    %829 = vmatpush.bf16.msra.mxu0 %v553
    %830 = vmatpush.bf16.msra.mxu0 %v551
    %831 = vmatpush.bf16.msra.mxu0 %v549
    %832 = vmatmul.bf16.gmra.mxu0 %v68
    %v833 = vpop.f32.mrf.mxu0
    %v834 = vadd.f32 %v821, %v833
    %v835 = vpop.f32.mrf.mxu0
    %836 = vdwg.mxu0
    %837 = vmatpush.bf16.msra.mxu0 0
    %838 = vmatpush.bf16.msra.mxu0 0
    %839 = vmatpush.bf16.msra.mxu0 0
    %840 = vmatpush.bf16.msra.mxu0 0
    %841 = vmatpush.bf16.msra.mxu0 0
    %842 = vmatpush.bf16.msra.mxu0 0
    %843 = vmatpush.bf16.msra.mxu0 0
    %844 = vmatpush.bf16.msra.mxu0 %v565
    %845 = vmatmul.bf16.gmra.mxu0 %v666
    %v846 = vpop.f32.mrf.mxu0
    %v847 = vadd.f32 %v834, %v846
    %v848 = vpop.f32.mrf.mxu0
    %849 = vdwg.mxu0
    %v850 = vpack.c.bf16 %v847, %v756
    %v851 = vunpack.c.l.bf16 %v850
    %v852 = vunpack.c.h.bf16 %v850
    %v853 = vmax.f32 %v851, 0.0
    %v854 = vmax.f32 %v852, 0.0
    %v855 = vpack.c.bf16 %v853, %v853
    %v856 = vpack.c.bf16 %v854, %v854
    %v857 = vld [vmem:[#allocation2] sm:$0xf]
    %v858 = vld [vmem:[#allocation2 + $0x4] sm:$0xf]
    %v859 = vld [vmem:[#allocation2 + $0x8] sm:$0xf]
    %v860 = vld [vmem:[#allocation2 + $0xc] sm:$0xf]
    %v861 = vld [vmem:[#allocation2 + $0x10] sm:$0xf]
    %v862 = vld [vmem:[#allocation2 + $0x14] sm:$0xf]
    %v863 = vld [vmem:[#allocation2 + $0x18] sm:$0xf]
    %v864 = vld [vmem:[#allocation2 + $0x1c] sm:$0xf]
    %v865 = vld [vmem:[#allocation2 + $0x20] sm:$0xf]
    %v866 = vld [vmem:[#allocation2 + $0x24] sm:$0xf]
    %v867 = vld [vmem:[#allocation2 + $0x28] sm:$0xf]
    %v868 = vld [vmem:[#allocation2 + $0x2c] sm:$0xf]
    %v869 = vld [vmem:[#allocation2 + $0x30] sm:$0xf]
    %v870 = vld [vmem:[#allocation2 + $0x34] sm:$0xf]
    %v871 = vld [vmem:[#allocation2 + $0x38] sm:$0xf]
    %v872 = vld [vmem:[#allocation2 + $0x3c] sm:$0xf]
    %v873 = vld [vmem:[#allocation2 + $0x40] sm:$0xf]
    %v874 = vld [vmem:[#allocation2 + $0x44] sm:$0xf]
    %v875 = vld [vmem:[#allocation2 + $0x48] sm:$0xf]
    %v876 = vld [vmem:[#allocation2 + $0x4c] sm:$0xf]
    %v877 = vld [vmem:[#allocation2 + $0x50] sm:$0xf]
    %v878 = vld [vmem:[#allocation2 + $0x54] sm:$0xf]
    %v879 = vld [vmem:[#allocation2 + $0x58] sm:$0xf]
    %v880 = vld [vmem:[#allocation2 + $0x5c] sm:$0xf]
    %v881 = vld [vmem:[#allocation2 + $0x60] sm:$0xf]
    %v882 = vld [vmem:[#allocation2 + $0x64] sm:$0xf]
    %v883 = vld [vmem:[#allocation2 + $0x68] sm:$0xf]
    %v884 = vld [vmem:[#allocation2 + $0x6c] sm:$0xf]
    %v885 = vld [vmem:[#allocation2 + $0x70] sm:$0xf]
    %v886 = vld [vmem:[#allocation2 + $0x74] sm:$0xf]
    %v887 = vld [vmem:[#allocation2 + $0x78] sm:$0xf]
    %v888 = vld [vmem:[#allocation2 + $0x7c] sm:$0xf]
    %v889 = vld [vmem:[%s4] sm:$0x1]
    %v891 = vperm.slane %v889, 0
    %v925 = vunpack.c.l.b16 %v857
    %v926 = vunpack.c.l.b16 %v858
    %v927 = vunpack.c.l.b16 %v859
    %v928 = vunpack.c.l.b16 %v860
    %v929 = vunpack.c.l.b16 %v861
    %v930 = vunpack.c.l.b16 %v862
    %v931 = vunpack.c.l.b16 %v863
    %v932 = vunpack.c.l.b16 %v864
    %v933 = vunpack.c.l.b16 %v865
    %v934 = vunpack.c.l.b16 %v866
    %v935 = vunpack.c.l.b16 %v867
    %v936 = vunpack.c.l.b16 %v868
    %v937 = vunpack.c.l.b16 %v869
    %v938 = vunpack.c.l.b16 %v870
    %v939 = vunpack.c.l.b16 %v871
    %v940 = vunpack.c.l.b16 %v872
    %v941 = vunpack.c.l.b16 %v873
    %v942 = vunpack.c.l.b16 %v874
    %v943 = vunpack.c.l.b16 %v875
    %v944 = vunpack.c.l.b16 %v876
    %v945 = vunpack.c.l.b16 %v877
    %v946 = vunpack.c.l.b16 %v878
    %v947 = vunpack.c.l.b16 %v879
    %v948 = vunpack.c.l.b16 %v880
    %v949 = vunpack.c.l.b16 %v881
    %v950 = vunpack.c.l.b16 %v882
    %v951 = vunpack.c.l.b16 %v883
    %v952 = vunpack.c.l.b16 %v884
    %v953 = vunpack.c.l.b16 %v885
    %v954 = vunpack.c.l.b16 %v886
    %v955 = vunpack.c.l.b16 %v887
    %v956 = vunpack.c.l.b16 %v888
    %v957 = vpack.c.b16 %v926, %v925
    %v958 = vpack.c.b16 %v928, %v927
    %v959 = vpack.c.b16 %v930, %v929
    %v960 = vpack.c.b16 %v932, %v931
    %v961 = vpack.c.b16 %v934, %v933
    %v962 = vpack.c.b16 %v936, %v935
    %v963 = vpack.c.b16 %v938, %v937
    %v964 = vpack.c.b16 %v940, %v939
    %v965 = vpack.c.b16 %v942, %v941
    %v966 = vpack.c.b16 %v944, %v943
    %v967 = vpack.c.b16 %v946, %v945
    %v968 = vpack.c.b16 %v948, %v947
    %v969 = vpack.c.b16 %v950, %v949
    %v970 = vpack.c.b16 %v952, %v951
    %v971 = vpack.c.b16 %v954, %v953
    %v972 = vpack.c.b16 %v956, %v955
    %989 = vmatpush.bf16.msra.mxu0 %v964
    %990 = vmatpush.bf16.msra.mxu0 %v963
    %991 = vmatpush.bf16.msra.mxu0 %v962
    %992 = vmatpush.bf16.msra.mxu0 %v961
    %993 = vmatpush.bf16.msra.mxu0 %v960
    %994 = vmatpush.bf16.msra.mxu0 %v959
    %995 = vmatpush.bf16.msra.mxu0 %v958
    %996 = vmatpush.bf16.msra.mxu0 %v957
    %997 = vmatmul.bf16.gmra.mxu0 %v855
    %v998 = vpop.f32.mrf.mxu0
    %v999 = vadd.f32 %v891, %v998
    %v1000 = vpop.f32.mrf.mxu0
    %1001 = vdwg.mxu0
    %1002 = vmatpush.bf16.msra.mxu0 %v972
    %1003 = vmatpush.bf16.msra.mxu0 %v971
    %1004 = vmatpush.bf16.msra.mxu0 %v970
    %1005 = vmatpush.bf16.msra.mxu0 %v969
    %1006 = vmatpush.bf16.msra.mxu0 %v968
    %1007 = vmatpush.bf16.msra.mxu0 %v967
    %1008 = vmatpush.bf16.msra.mxu0 %v966
    %1009 = vmatpush.bf16.msra.mxu0 %v965
    %1010 = vmatmul.bf16.gmra.mxu0 %v856
    %v1011 = vpop.f32.mrf.mxu0
    %v1012 = vadd.f32 %v999, %v1011
    %v1013 = vpop.f32.mrf.mxu0
    %1014 = vdwg.mxu0
    %vm1015 = vcmask 80896
    %1016 = vst.msk [vmem:[#allocation5] sm:$0xff] %vm1015, %v1012
    // Predicated region
    $region26: #{student_net_forward.1} parent=1 // pred_check
      _
    $region27: #{student_net_forward.1} parent=1 // pred_check_branch
      %1018 = sbr.rel (0) target = $region29
    $region28: #{student_net_forward.1} parent=1 // pred_region
      %1020 = vsyncadd [#allocation4], 0
      %s1022 = sshll.u32 [#allocation5], 4
      %s1023 = int_to_ptr.vmem [resolvable:$true] %s1022
      %s1024 = sshll.u32 %s5, 4
      %s1025 = int_to_ptr.hbm [resolvable:$true] %s1024
      %1027 = dma.vmem_to_hbm [thread:$0]  %s1023, 128, %s1025, [#allocation4]
    $region29: #{student_net_forward.1} parent=1 // pred_fallthru
      _
    // Predicated region
    $region30: #{student_net_forward.1} parent=1 // pred_check
      _
    $region31: #{student_net_forward.1} parent=1 // pred_check_branch
      %1029 = sbr.rel (0) target = $region33
    $region32: #{student_net_forward.1} parent=1 // pred_region
      %1031 = dma.done [#allocation4], 128
    $region33: #{student_net_forward.1} parent=1 // pred_fallthru
      _
    %1032 = vsyncpa [#allocation3], 1
    %1033 = vsyncpa [#allocation4], 1

</llo_original>
